<compile_context>
chip_gen: v7x
topology: tpu7x:2x2x1
jax: 0.10.0
libtpu: 0.0.40
codegen_flags: <defaults>
</compile_context>

<pallas_src>
import functools
import math

import jax
import jax.numpy as jnp
from jax.experimental import pallas as pl
from jax.experimental.pallas import tpu as pltpu

_SUBLANE = 8
_LANE = 128


def _round_up(x: int, m: int) -> int:
    return (x + m - 1) // m * m


def _build_pe(d_model: int, max_len: int = 5000) -> jnp.ndarray:
    """Replicates the PyTorch __init__ buffer: shape (max_len, 1, d_model), f32."""
    position = jnp.arange(0, max_len, dtype=jnp.float32)[:, None]          # (max_len, 1)
    div_term = jnp.exp(
        jnp.arange(0, d_model, 2, dtype=jnp.float32) * (-math.log(10000.0) / d_model)
    )                                                                       # (ceil(d/2),)
    angles = position * div_term                                            # (max_len, ceil(d/2))
    pe = jnp.zeros((max_len, d_model), dtype=jnp.float32)
    pe = pe.at[:, 0::2].set(jnp.sin(angles))
    pe = pe.at[:, 1::2].set(jnp.cos(angles)[:, : d_model // 2])
    return pe[:, None, :]                                                   # (max_len, 1, d_model)


def _pe_add_kernel(x_ref, pe_ref, o_ref, *, batch: int):
    # x_ref/o_ref: (ts, B*D); pe_ref: (ts, D) f32.
    pe = pe_ref[...]
    if batch > 1:
        # Lane-axis replication of the pe row-block across the batch; whole-tile
        # copies on idle VPU/XLU slots -- invisible under the DMA bound.
        pe = jnp.concatenate([pe] * batch, axis=-1)                         # (ts, B*D)
    # Add in f32 (matches the PyTorch f32 buffer numerics), cast on store.
    o_ref[...] = (x_ref[...].astype(jnp.float32) + pe).astype(o_ref.dtype)


def _default_target_block_bytes() -> int:
    """~8 MiB blocks on v7x (64 MiB VMEM, ~2.2-2.5x HBM BW), ~4 MiB elsewhere."""
    try:
        vmem_cap = int(getattr(pltpu.get_tpu_info(), "vmem_capacity_bytes", 0))
    except Exception:
        vmem_cap = 0
    if vmem_cap and vmem_cap <= (64 << 20):
        return 8 << 20
    return 4 << 20


def _choose_block_rows(S: int, x_row_bytes: int, pe_row_bytes: int,
                       target_block_bytes: int) -> int:
    """Sequence rows per block, sized on PADDED bytes.

    Budgets the double-buffered working set (2 x (x + out + pe) blocks) so the
    scoped-VMEM request below always covers it on every generation.
    """
    max_working_bytes = 36 << 20                       # fits v7x's 64 MiB physical VMEM
    per_row_ws = 2 * (2 * x_row_bytes + pe_row_bytes)  # 2 bufs x (x+out) + 2 bufs x pe
    rows_ws_cap = max(_SUBLANE, (max_working_bytes // per_row_ws) // _SUBLANE * _SUBLANE)
    rows = max(_SUBLANE, (target_block_bytes // max(x_row_bytes, 1)) // _SUBLANE * _SUBLANE)
    rows = min(rows, rows_ws_cap)

    if rows >= S:
        # Whole array fits one block.  On v7x (2 TensorCores) still split
        # mid-sized inputs in two so both cores get work; tiny inputs stay a
        # single whole-array block (no pipeline at all).
        if S >= 2 * _SUBLANE and S * x_row_bytes > (1 << 20):
            return min(S, _round_up(pl.cdiv(S, 2), _SUBLANE))
        return S

    # Multi-step: prefer an even grid-step count (megacore pairing on v7x).
    steps = pl.cdiv(S, rows)
    if steps > 1 and steps % 2:
        rows2 = max(_SUBLANE, _round_up(pl.cdiv(S, steps + 1), _SUBLANE))
        if pl.cdiv(S, rows2) % 2 == 0:
            rows = rows2
    return rows


def positional_encoding(
    x: jnp.ndarray,
    pe: jnp.ndarray,
    *,
    block_rows: int | None = None,
    target_block_bytes: int | None = None,
    donate_x: bool = False,
) -> jnp.ndarray:
    """x: (S, B, D); pe: (max_len, 1, D) f32 table.  Returns x + pe[:S] (broadcast over B).

    donate_x=True aliases the output onto x's buffer (input_output_aliases).  This
    is only safe because each output block reads exactly its own input block; if
    the kernel ever reads neighboring positions, drop the alias.
    """
    S, B, D = x.shape
    max_len = pe.shape[0]
    assert max_len >= S, "sequence longer than positional-encoding table"

    # Free, layout-preserving views: collapse minor dims / squeeze the size-1 dim.
    x2d = x.reshape(S, B * D)
    pe2d = pe.reshape(max_len, D).astype(jnp.float32)   # no-op cast (table is f32)

    itemsize = jnp.dtype(x.dtype).itemsize
    sub_pack_x = max(_SUBLANE, _SUBLANE * 4 // itemsize)          # 8 f32, 16 bf16, 32 int8
    x_row_bytes = _round_up(B * D, _LANE) * itemsize              # lane-padded bytes / seq row
    pe_row_bytes = _round_up(D, _LANE) * 4                        # pe is always f32

    if target_block_bytes is None:
        target_block_bytes = _default_target_block_bytes()
    ts = block_rows if block_rows is not None else _choose_block_rows(
        S, x_row_bytes, pe_row_bytes, target_block_bytes)
    grid = (pl.cdiv(S, ts),)

    # Explicit scoped-VMEM request from the padded, double-buffered working set
    # (v5e's 16 MiB default would otherwise be too small at these block sizes).
    xo_block = _round_up(ts, sub_pack_x) * x_row_bytes
    pe_block = _round_up(ts, _SUBLANE) * pe_row_bytes
    need = 2 * (2 * xo_block + pe_block)
    vmem_limit = int(min(max(need * 3 // 2, 32 << 20), 50 << 20))

    kernel = functools.partial(_pe_add_kernel, batch=B)

    out2d = pl.pallas_call(
        kernel,
        out_shape=jax.ShapeDtypeStruct((S, B * D), x.dtype),
        grid_spec=pltpu.PrefetchScalarGridSpec(
            num_scalar_prefetch=0,
            grid=grid,
            in_specs=[
                pl.BlockSpec((ts, B * D), lambda i: (i, 0)),   # x (lane-dense when B*D % 128 == 0)
                pl.BlockSpec((ts, D), lambda i: (i, 0)),       # pe row-block (only first S rows fetched)
            ],
            out_specs=pl.BlockSpec((ts, B * D), lambda i: (i, 0)),
        ),
        compiler_params=pltpu.CompilerParams(
            dimension_semantics=("parallel",),       # shards the 1-D grid over v7x's 2 TCs
            vmem_limit_bytes=vmem_limit,
        ),
        cost_estimate=pl.CostEstimate(
            flops=S * B * D,
            transcendentals=0,
            bytes_accessed=2 * S * B * D * itemsize + S * D * 4,
        ),
        input_output_aliases=({0: 0} if donate_x else {}),
    )(x2d, pe2d)

    return out2d.reshape(S, B, D)


if __name__ == "__main__":
    # Small shapes matching the module: (seq_len, batch, d_model).
    seq_len, batch, d_model = 8, 2, 32
    max_len = 16

    key = jax.random.PRNGKey(0)
    x = jax.random.normal(key, (seq_len, batch, d_model), dtype=jnp.float32)
    pe = _build_pe(d_model, max_len=max_len)

    out = positional_encoding(x, pe)                 # tiny input -> single-block path
    out = jax.block_until_ready(out)

    ref = x + pe[:seq_len]
    assert out.shape == x.shape
    assert jnp.allclose(out, ref, atol=1e-6), "mismatch vs reference (single block)"

    # Exercise the multi-step / partial-edge-block path with a forced small tile
    # (also exercises the unsliced pe table: max_len=64 > S=20).
    s2, b2, d2 = 20, 2, 32
    x2 = jax.random.normal(jax.random.PRNGKey(0), (s2, b2, d2), dtype=jnp.float32)
    pe2 = _build_pe(d2, max_len=64)
    out2 = jax.block_until_ready(positional_encoding(x2, pe2, block_rows=8))
    ref2 = x2 + pe2[:s2]
    assert jnp.allclose(out2, ref2, atol=1e-6), "mismatch vs reference (tiled)"

    print("KERNEL_OK")
</pallas_src>

<mosaic_0001>
module attributes {stable_mosaic.version = 11 : i64} {
  func.func @_pe_add_kernel(%arg0: i32, %arg1: memref<8x64xf32, #tpu.memory_space<vmem>>, %arg2: memref<8x32xf32, #tpu.memory_space<vmem>>, %arg3: memref<8x64xf32, #tpu.memory_space<vmem>>) attributes {dimension_semantics = [#tpu.dimension_semantics<parallel>], iteration_bounds = array<i64: 1>, scalar_prefetch = 0 : i64, scratch_operands = 0 : i64, tpu.core_type = #tpu.core_type<tc>, window_params = [{transform_indices = @transform_0, window_bounds = array<i64: 8, 64>}, {transform_indices = @transform_1, window_bounds = array<i64: 8, 32>}, {transform_indices = @transform_2, window_bounds = array<i64: 8, 64>}]} {
    %c0 = arith.constant 0 : index
    %c0_0 = arith.constant 0 : index
    %0 = vector.load %arg2[%c0, %c0_0] : memref<8x32xf32, #tpu.memory_space<vmem>>, vector<8x32xf32>
    %1 = tpu.concatenate %0, %0 in 1 : vector<8x32xf32>, vector<8x32xf32> -> vector<8x64xf32>
    %c0_1 = arith.constant 0 : index
    %c0_2 = arith.constant 0 : index
    %2 = vector.load %arg1[%c0_1, %c0_2] : memref<8x64xf32, #tpu.memory_space<vmem>>, vector<8x64xf32>
    %3 = arith.addf %2, %1 : vector<8x64xf32>
    %c0_3 = arith.constant 0 : index
    %c0_4 = arith.constant 0 : index
    %4 = vector.load %arg3[%c0_3, %c0_4] : memref<8x64xf32, #tpu.memory_space<vmem>>, vector<8x64xf32>
    tpu.vector_store %arg3[%c0_3, %c0_4], %3 {strides = array<i32>} : memref<8x64xf32, #tpu.memory_space<vmem>>, vector<8x64xf32>,
    return
  }
  func.func @transform_0(%arg0: i32) -> (i32, i32) {
    %c0_i32 = arith.constant 0 : i32
    %c0_i32_0 = arith.constant 0 : i32
    return %arg0, %c0_i32 : i32, i32
  }
  func.func @transform_1(%arg0: i32) -> (i32, i32) {
    %c0_i32 = arith.constant 0 : i32
    %c0_i32_0 = arith.constant 0 : i32
    return %arg0, %c0_i32 : i32, i32
  }
  func.func @transform_2(%arg0: i32) -> (i32, i32) {
    %c0_i32 = arith.constant 0 : i32
    %c0_i32_0 = arith.constant 0 : i32
    return %arg0, %c0_i32 : i32, i32
  }
}

</mosaic_0001>

<llo_original>
// kernel: tpu_custom_call.1
$region0: #{tpu_custom_call.1}
  #allocation0 [shape = 'u32[]', space=smem, size = 0x4, offset = 0x4, fixed_abs, tag = 'smem constant byte address 0x4 - core index']
  #allocation1 [shape = 'u32[144,128]{1,0:T(1,128)}', space=vmem, size = 0x12000, scoped, tag = 'internal scratch']
  %s0 = inlined_call_operand.hbm [shape: f32[8,64], index: 0, kind: input, shape index: {}]
  %s1 = inlined_call_operand.hbm [shape: f32[16,32], index: 1, kind: input, shape index: {}]
  %s2 = inlined_call_operand.hbm [shape: f32[8,64], index: 2, kind: output, shape index: {}]
  %s3 = sld [smem:[#allocation0]]
  $region26: #{tpu_custom_call.1} parent=0
    _
  %s5 = ssub.s32 1, %s3
  %s6 = scalar_select 0, %s5, %s3
  $region1: #{tpu_custom_call.1} parent=0
    #allocation2 [shape = 'u8[4096]{0}', space=vmem, size = 0x1000, scoped, tag = 'input window, operand 0, single buffered']
    #allocation3 [shape = 's32[1]{0}', space=sflag, size = 0x4, scoped, tag = 'scoped memory for tpu_custom_call.1']
    #allocation4 [shape = 's32[1]{0}', space=sflag, size = 0x4, scoped, tag = 'scoped memory for tpu_custom_call.1']
    #allocation5 [shape = 'u8[4096]{0}', space=vmem, size = 0x1000, scoped, tag = 'input window, operand 1, single buffered']
    #allocation6 [shape = 's32[1]{0}', space=sflag, size = 0x4, scoped, tag = 'scoped memory for tpu_custom_call.1']
    #allocation7 [shape = 'u8[4096]{0}', space=vmem, size = 0x1000, scoped, tag = 'output window, operand 0, single buffered']
    %7 = vsyncpa [#allocation3], 0
    %8 = vsyncpa [#allocation6], 0
    %9 = vsyncpa [#allocation4], 0
    // Predicated region
    $region2: #{tpu_custom_call.1} parent=1 // pred_check
      _
    $region3: #{tpu_custom_call.1} parent=1 // pred_check_branch
      %11 = sbr.rel (0) target = $region5
    $region4: #{tpu_custom_call.1} parent=1 // pred_region
      %s13 = ssub.s32 128, 128
      %14 = vsyncadd [#allocation3], %s13
      %s16 = sshll.u32 [#allocation2], 4
      %s17 = int_to_ptr.vmem [resolvable:$true] %s16
      %19 = dma.hbm_to_vmem [thread:$0]  %s0, 128, %s17, [#allocation3]
    $region5: #{tpu_custom_call.1} parent=1 // pred_fallthru
      _
    // Predicated region
    $region6: #{tpu_custom_call.1} parent=1 // pred_check
      _
    $region7: #{tpu_custom_call.1} parent=1 // pred_check_branch
      %21 = sbr.rel (0) target = $region9
    $region8: #{tpu_custom_call.1} parent=1 // pred_region
      %s23 = ssub.s32 128, 128
      %24 = vsyncadd [#allocation6], %s23
      %s26 = sshll.u32 [#allocation5], 4
      %s27 = int_to_ptr.vmem [resolvable:$true] %s26
      %29 = dma.hbm_to_vmem [thread:$0]  %s1, 128, %s27, [#allocation6]
    $region9: #{tpu_custom_call.1} parent=1 // pred_fallthru
      _
    // Predicated region
    $region10: #{tpu_custom_call.1} parent=1 // pred_check
      _
    $region11: #{tpu_custom_call.1} parent=1 // pred_check_branch
      %31 = sbr.rel (0) target = $region13
    $region12: #{tpu_custom_call.1} parent=1 // pred_region
      %32 = dma.done [#allocation3], 128
    $region13: #{tpu_custom_call.1} parent=1 // pred_fallthru
      _
    // Predicated region
    $region14: #{tpu_custom_call.1} parent=1 // pred_check
      _
    $region15: #{tpu_custom_call.1} parent=1 // pred_check_branch
      %34 = sbr.rel (0) target = $region17
    $region16: #{tpu_custom_call.1} parent=1 // pred_region
      %35 = dma.done [#allocation6], 128
    $region17: #{tpu_custom_call.1} parent=1 // pred_fallthru
      _
    %v36 = vld [vmem:[#allocation5] sm:$0xff]
    %38 = vrot.lane.b32.xlu0 %v36, 32
    %v39 = vpop.permute.xlu0 %38
    %vm41 = vcmask 261120
    %v42 = vsel %vm41, %v36, %v39
    %v43 = vld [vmem:[#allocation2] sm:$0xff]
    %v44 = vadd.f32 %v43, %v42
    %vm45 = vcmask 523264
    %46 = vst.msk [vmem:[#allocation7] sm:$0xff] %vm45, %v44
    // Predicated region
    $region18: #{tpu_custom_call.1} parent=1 // pred_check
      _
    $region19: #{tpu_custom_call.1} parent=1 // pred_check_branch
      %48 = sbr.rel (0) target = $region21
    $region20: #{tpu_custom_call.1} parent=1 // pred_region
      %s50 = ssub.s32 128, 128
      %51 = vsyncadd [#allocation4], %s50
      %s53 = sshll.u32 [#allocation7], 4
      %s54 = int_to_ptr.vmem [resolvable:$true] %s53
      %56 = dma.vmem_to_hbm [thread:$0]  %s54, 128, %s2, [#allocation4]
    $region21: #{tpu_custom_call.1} parent=1 // pred_fallthru
      _
    // Predicated region
    $region22: #{tpu_custom_call.1} parent=1 // pred_check
      _
    $region23: #{tpu_custom_call.1} parent=1 // pred_check_branch
      %58 = sbr.rel (0) target = $region25
    $region24: #{tpu_custom_call.1} parent=1 // pred_region
      %59 = dma.done [#allocation4], 128
    $region25: #{tpu_custom_call.1} parent=1 // pred_fallthru
      _
    %60 = vsyncpa [#allocation3], 1
    %61 = vsyncpa [#allocation6], 1
    %62 = vsyncpa [#allocation4], 1

</llo_original>
